<compile_context>
chip_gen: v6e
topology: v6e:2x2x1
jax: 0.10.0
libtpu: 0.0.40
codegen_flags: <defaults>
</compile_context>

<pallas_src>
from abc import abstractmethod

import jax
import jax.numpy as jnp
from jax.experimental import pallas as pl
from jax.experimental.pallas import tpu as pltpu

_LANES = 128
_MAX_TILE_ROWS = 2048  # 2048 x 128 f32 = 1 MiB per input block


def pallas_mse(pred: jax.Array, tgt: jax.Array) -> jax.Array:
    """Mean squared error over all elements; the heavy reduction runs in Pallas."""
    assert pred.shape == tgt.shape, "shape mismatch"
    n_elems = pred.size

    flat_p = pred.reshape(-1)
    flat_t = tgt.reshape(-1)

    # Sublane granularity for clean (unmasked) tiles: 8 rows for 4-byte,
    # 16 for 2-byte (bf16 packing), 32 for 1-byte dtypes.
    itemsize = jnp.dtype(pred.dtype).itemsize
    sub = {4: 8, 2: 16, 1: 32}.get(itemsize, 8)
    min_tile = sub * _LANES

    rem = n_elems % min_tile
    if rem:
        # TODO(synk): this pad copies the tensors; it only triggers for element
        # counts not divisible by sub*128 (rare for real NCHW activations).
        pad = min_tile - rem
        flat_p = jnp.pad(flat_p, (0, pad))
        flat_t = jnp.pad(flat_t, (0, pad))

    padded = flat_p.shape[0]
    rows = padded // _LANES                     # always a multiple of `sub` (>= 8)
    tile_rows = min(_MAX_TILE_ROWS, rows)       # multiple of 8 by construction
    num_blocks = pl.cdiv(rows, tile_rows)
    # Only the genuinely out-of-bounds overhang of the last block needs masking
    # (padded zeros already contribute 0 to the sum).
    needs_mask = (rows % tile_rows) != 0

    p2d = flat_p.reshape(rows, _LANES)          # metadata-only reshape
    t2d = flat_t.reshape(rows, _LANES)

    def kernel(pred_ref, tgt_ref, out_ref):
        d = pred_ref[...].astype(jnp.float32) - tgt_ref[...].astype(jnp.float32)
        dd = d * d
        if needs_mask:
            # Global element index of each (row, lane) position; zero out the
            # out-of-bounds tail of the last block (garbage VMEM contents).
            base = pl.program_id(0) * (tile_rows * _LANES)
            row = jax.lax.broadcasted_iota(jnp.int32, (tile_rows, _LANES), 0)
            lane = jax.lax.broadcasted_iota(jnp.int32, (tile_rows, _LANES), 1)
            idx = base + row * _LANES + lane
            dd = jnp.where(idx < n_elems, dd, jnp.float32(0.0))
        # (tile_rows, 128) -> (tile_rows//8, 8, 128): free reshape (matches the
        # native (8,128) tiling); leading-axis sum = pure VPU vreg adds, no XLU.
        out_ref[...] = dd.reshape(tile_rows // 8, 8, _LANES).sum(axis=0)

    partials = pl.pallas_call(
        kernel,
        out_shape=jax.ShapeDtypeStruct((num_blocks, 8, _LANES), jnp.float32),
        grid=(num_blocks,),
        in_specs=[
            pl.BlockSpec((tile_rows, _LANES), lambda i: (i, 0)),
            pl.BlockSpec((tile_rows, _LANES), lambda i: (i, 0)),
        ],
        out_specs=pl.BlockSpec((None, 8, _LANES), lambda i: (i, 0, 0)),
        compiler_params=pltpu.CompilerParams(
            # Independent per-block partial sums -> safe to shard across
            # TensorCores (v7x megacore); neutral on v5e/v6e.
            dimension_semantics=("parallel",),
            vmem_limit_bytes=32 * 1024 * 1024,
        ),
    )(p2d, t2d)

    # Tiny final reduction (num_blocks * 4 KiB) outside the kernel.
    return (jnp.sum(partials) / jnp.float32(n_elems)).astype(jnp.float32)


class BaseLoss:
    """Faithful port of the abstract PyTorch BaseLoss: stores config, abstract forward."""

    def __init__(self, loss_config):
        self._config = loss_config

    @abstractmethod
    def forward(self, dict_outputs: dict) -> dict:
        # TODO(synk): BaseLoss.forward is abstract in the source module; there is
        # no concrete compute to translate at the base-class level.
        raise NotImplementedError

    def __call__(self, dict_outputs: dict) -> dict:
        return self.forward(dict_outputs)


class MSELoss(BaseLoss):
    """Minimal concrete subclass exercising the Pallas reduction kernel."""

    def forward(self, dict_outputs: dict) -> dict:
        pred = dict_outputs["predictions"]
        tgt = dict_outputs["targets"]
        return {"loss": pallas_mse(pred, tgt)}


if __name__ == "__main__":
    key = jax.random.PRNGKey(0)
    k1, k2, k3, k4, k5, k6 = jax.random.split(key, 6)

    loss_mod = MSELoss(loss_config={"name": "mse"})

    # 1) Small NCHW-shaped inputs consistent with a vision-style loss module.
    B, C, H, W = 2, 4, 16, 16
    pred = jax.random.normal(k1, (B, C, H, W), dtype=jnp.float32)
    tgt = jax.random.normal(k2, (B, C, H, W), dtype=jnp.float32)
    out = loss_mod({"predictions": pred, "targets": tgt})
    loss_val = jax.block_until_ready(out["loss"])
    ref = jnp.mean((pred - tgt) ** 2)
    assert jnp.allclose(loss_val, ref, rtol=1e-5, atol=1e-6), (loss_val, ref)

    # 2) Multi-block grid with a partially out-of-bounds (masked) tail block.
    pred2 = jax.random.normal(k3, (2, 5, 256, 128), dtype=jnp.float32)  # 2560 rows > 2048
    tgt2 = jax.random.normal(k4, (2, 5, 256, 128), dtype=jnp.float32)
    loss2 = jax.block_until_ready(loss_mod({"predictions": pred2, "targets": tgt2})["loss"])
    ref2 = jnp.mean((pred2 - tgt2) ** 2)
    assert jnp.allclose(loss2, ref2, rtol=1e-5, atol=1e-6), (loss2, ref2)

    # 3) Unaligned element count (exercises the minimal-pad path).
    pred3 = jax.random.normal(k5, (3, 5, 7, 11), dtype=jnp.float32)
    tgt3 = jax.random.normal(k6, (3, 5, 7, 11), dtype=jnp.float32)
    loss3 = jax.block_until_ready(loss_mod({"predictions": pred3, "targets": tgt3})["loss"])
    ref3 = jnp.mean((pred3 - tgt3) ** 2)
    assert jnp.allclose(loss3, ref3, rtol=1e-5, atol=1e-6), (loss3, ref3)

    print("KERNEL_OK")
</pallas_src>

<mosaic_0001>
module attributes {stable_mosaic.version = 11 : i64} {
  func.func @kernel(%arg0: i32, %arg1: memref<16x128xf32, #tpu.memory_space<vmem>>, %arg2: memref<16x128xf32, #tpu.memory_space<vmem>>, %arg3: memref<1x8x128xf32, #tpu.memory_space<vmem>>) attributes {dimension_semantics = [#tpu.dimension_semantics<parallel>], iteration_bounds = array<i64: 1>, scalar_prefetch = 0 : i64, scratch_operands = 0 : i64, tpu.core_type = #tpu.core_type<tc>, window_params = [{transform_indices = @transform_0, window_bounds = array<i64: 16, 128>}, {transform_indices = @transform_1, window_bounds = array<i64: 16, 128>}, {transform_indices = @transform_2, window_bounds = array<i64: 1, 8, 128>}]} {
    %c0 = arith.constant 0 : index
    %c0_0 = arith.constant 0 : index
    %0 = vector.load %arg1[%c0, %c0_0] : memref<16x128xf32, #tpu.memory_space<vmem>>, vector<16x128xf32>
    %c0_1 = arith.constant 0 : index
    %c0_2 = arith.constant 0 : index
    %1 = vector.load %arg2[%c0_1, %c0_2] : memref<16x128xf32, #tpu.memory_space<vmem>>, vector<16x128xf32>
    %2 = arith.subf %0, %1 : vector<16x128xf32>
    %3 = arith.mulf %2, %2 : vector<16x128xf32>
    %4 = vector.shape_cast %3 : vector<16x128xf32> to vector<2x8x128xf32>
    %cst = arith.constant dense<0.000000e+00> : vector<8x128xf32>
    %5 = vector.multi_reduction <add>, %4, %cst [0] : vector<2x8x128xf32> to vector<8x128xf32>
    %c0_3 = arith.constant 0 : index
    %c0_4 = arith.constant 0 : index
    %c0_5 = arith.constant 0 : index
    %6 = vector.load %arg3[%c0_3, %c0_4, %c0_5] : memref<1x8x128xf32, #tpu.memory_space<vmem>>, vector<1x8x128xf32>
    %7 = vector.shape_cast %6 : vector<1x8x128xf32> to vector<8x128xf32>
    %8 = vector.shape_cast %5 : vector<8x128xf32> to vector<1x8x128xf32>
    tpu.vector_store %arg3[%c0_3, %c0_4, %c0_5], %8 {strides = array<i32>} : memref<1x8x128xf32, #tpu.memory_space<vmem>>, vector<1x8x128xf32>,
    return
  }
  func.func @transform_0(%arg0: i32) -> (i32, i32) {
    %c0_i32 = arith.constant 0 : i32
    %c0_i32_0 = arith.constant 0 : i32
    return %arg0, %c0_i32 : i32, i32
  }
  func.func @transform_1(%arg0: i32) -> (i32, i32) {
    %c0_i32 = arith.constant 0 : i32
    %c0_i32_0 = arith.constant 0 : i32
    return %arg0, %c0_i32 : i32, i32
  }
  func.func @transform_2(%arg0: i32) -> (i32, i32, i32) {
    %c0_i32 = arith.constant 0 : i32
    %c0_i32_0 = arith.constant 0 : i32
    %c0_i32_1 = arith.constant 0 : i32
    return %arg0, %c0_i32, %c0_i32_0 : i32, i32, i32
  }
}

</mosaic_0001>

<llo_original>
// kernel: tpu_custom_call.1
$region0: #{tpu_custom_call.1}
  #allocation0 [shape = 'u32[]', space=smem, size = 0x4, offset = 0x4, fixed_abs, tag = 'smem constant byte address 0x4 - core index']
  #allocation1 [shape = 'u32[144,128]{1,0:T(1,128)}', space=vmem, size = 0x12000, scoped, tag = 'internal scratch']
  %s0 = inlined_call_operand.hbm [shape: f32[16,128], index: 0, kind: input, shape index: {}]
  %s1 = inlined_call_operand.hbm [shape: f32[16,128], index: 1, kind: input, shape index: {}]
  %s2 = inlined_call_operand.hbm [shape: f32[1,8,128], index: 2, kind: output, shape index: {}]
  %s3 = sld [smem:[#allocation0]]
  $region26: #{tpu_custom_call.1} parent=0
    _
  %s5 = ssub.s32 1, %s3
  %s6 = scalar_select 0, %s5, %s3
  $region1: #{tpu_custom_call.1} parent=0
    #allocation2 [shape = 'u8[8192]{0}', space=vmem, size = 0x2000, scoped, tag = 'input window, operand 0, single buffered']
    #allocation3 [shape = 's32[1]{0}', space=sflag, size = 0x4, scoped, tag = 'scoped memory for tpu_custom_call.1']
    #allocation4 [shape = 's32[1]{0}', space=sflag, size = 0x4, scoped, tag = 'scoped memory for tpu_custom_call.1']
    #allocation5 [shape = 'u8[8192]{0}', space=vmem, size = 0x2000, scoped, tag = 'input window, operand 1, single buffered']
    #allocation6 [shape = 's32[1]{0}', space=sflag, size = 0x4, scoped, tag = 'scoped memory for tpu_custom_call.1']
    #allocation7 [shape = 'u8[4096]{0}', space=vmem, size = 0x1000, scoped, tag = 'output window, operand 0, single buffered']
    %7 = vsyncpa [#allocation3], 0
    %8 = vsyncpa [#allocation6], 0
    %9 = vsyncpa [#allocation4], 0
    // Predicated region
    $region2: #{tpu_custom_call.1} parent=1 // pred_check
      _
    $region3: #{tpu_custom_call.1} parent=1 // pred_check_branch
      %11 = sbr.rel (0) target = $region5
    $region4: #{tpu_custom_call.1} parent=1 // pred_region
      %s13 = ssub.s32 256, 256
      %14 = vsyncadd [#allocation3], %s13
      %s15 = sshll.u32 [#allocation2], 4
      %s16 = int_to_ptr.vmem [resolvable:$true] %s15
      %21 = dma.hbm_to_vmem [thread:$0]  %s0, 256, %s16, [#allocation3], 128, 128, 8
    $region5: #{tpu_custom_call.1} parent=1 // pred_fallthru
      _
    // Predicated region
    $region6: #{tpu_custom_call.1} parent=1 // pred_check
      _
    $region7: #{tpu_custom_call.1} parent=1 // pred_check_branch
      %23 = sbr.rel (0) target = $region9
    $region8: #{tpu_custom_call.1} parent=1 // pred_region
      %s25 = ssub.s32 256, 256
      %26 = vsyncadd [#allocation6], %s25
      %s27 = sshll.u32 [#allocation5], 4
      %s28 = int_to_ptr.vmem [resolvable:$true] %s27
      %33 = dma.hbm_to_vmem [thread:$0]  %s1, 256, %s28, [#allocation6], 128, 128, 8
    $region9: #{tpu_custom_call.1} parent=1 // pred_fallthru
      _
    // Predicated region
    $region10: #{tpu_custom_call.1} parent=1 // pred_check
      _
    $region11: #{tpu_custom_call.1} parent=1 // pred_check_branch
      %35 = sbr.rel (0) target = $region13
    $region12: #{tpu_custom_call.1} parent=1 // pred_region
      %36 = dma.done [#allocation3], 256
    $region13: #{tpu_custom_call.1} parent=1 // pred_fallthru
      _
    // Predicated region
    $region14: #{tpu_custom_call.1} parent=1 // pred_check
      _
    $region15: #{tpu_custom_call.1} parent=1 // pred_check_branch
      %38 = sbr.rel (0) target = $region17
    $region16: #{tpu_custom_call.1} parent=1 // pred_region
      %39 = dma.done [#allocation6], 256
    $region17: #{tpu_custom_call.1} parent=1 // pred_fallthru
      _
    %v40 = vld [vmem:[#allocation2] sm:$0xff]
    %v41 = vld [vmem:[#allocation2 + $0x8] sm:$0xff]
    %v42 = vld [vmem:[#allocation5] sm:$0xff]
    %v43 = vld [vmem:[#allocation5 + $0x8] sm:$0xff]
    %v44 = vsub.f32 %v40, %v42
    %v45 = vsub.f32 %v41, %v43
    %v46 = vmul.f32 %v44, %v44
    %v47 = vmul.f32 %v45, %v45
    %v48 = vadd.f32 %v46, %v47
    %49 = vst [vmem:[#allocation7] sm:$0xff] %v48
    // Predicated region
    $region18: #{tpu_custom_call.1} parent=1 // pred_check
      _
    $region19: #{tpu_custom_call.1} parent=1 // pred_check_branch
      %51 = sbr.rel (0) target = $region21
    $region20: #{tpu_custom_call.1} parent=1 // pred_region
      %s53 = ssub.s32 128, 128
      %54 = vsyncadd [#allocation4], %s53
      %s56 = sshll.u32 [#allocation7], 4
      %s57 = int_to_ptr.vmem [resolvable:$true] %s56
      %59 = dma.vmem_to_hbm [thread:$0]  %s57, 128, %s2, [#allocation4]
    $region21: #{tpu_custom_call.1} parent=1 // pred_fallthru
      _
    // Predicated region
    $region22: #{tpu_custom_call.1} parent=1 // pred_check
      _
    $region23: #{tpu_custom_call.1} parent=1 // pred_check_branch
      %61 = sbr.rel (0) target = $region25
    $region24: #{tpu_custom_call.1} parent=1 // pred_region
      %62 = dma.done [#allocation4], 128
    $region25: #{tpu_custom_call.1} parent=1 // pred_fallthru
      _
    %63 = vsyncpa [#allocation3], 1
    %64 = vsyncpa [#allocation6], 1
    %65 = vsyncpa [#allocation4], 1

</llo_original>
